<compile_context>
chip_gen: v5e
topology: v5e:2x2
jax: 0.10.0
libtpu: 0.0.40
codegen_flags: <defaults>
</compile_context>

<pallas_src>
import functools

import jax
import jax.numpy as jnp
from jax.experimental import pallas as pl
from jax.experimental.pallas import tpu as pltpu

LANE = 128  # vreg lane width


# ---------------------------------------------------------------------------
# Kernel (batch on the lane axis)
# ---------------------------------------------------------------------------
def qnet_kernel(xa_ref, w_in_ref, b_in_ref, wc_ref, bc_ref, wo_ref, bo_ref,
                out_ref):
    # Fused input layer:  h == concat([relu(Ws@x + bs), relu(Wa@a + ba)])
    xa = xa_ref[...].astype(w_in_ref.dtype)                       # (4, TB)
    h = jnp.dot(w_in_ref[...], xa, preferred_element_type=jnp.float32)
    h = jnp.maximum(h + b_in_ref[...], 0.0)                       # (128, TB)

    # cat layer: (32,128) @ (128,TB) -> (32,TB)
    q = jnp.dot(wc_ref[...], h.astype(wc_ref.dtype),
                preferred_element_type=jnp.float32)
    q = jnp.maximum(q + bc_ref[...], 0.0)                         # (32, TB)

    # output layer (32 -> 1): VPU multiply + sublane reduce -> lane-dense
    # (1,TB) block; bo comes from SMEM as a scalar.
    out = jnp.sum(q * wo_ref[...], axis=0, keepdims=True) + bo_ref[0]
    out_ref[...] = out.astype(out_ref.dtype)                      # (1, TB)


# ---------------------------------------------------------------------------
# One-time parameter preparation (hoisted out of the per-call path)
# ---------------------------------------------------------------------------
def prepare_params(params, compute_dtype=jnp.float32):
    """Pack PyTorch-layout (out,in) weights into the transposed fused layout.

    compute_dtype=jnp.bfloat16 enables the native bf16 MXU path on v6e/v7x
    (the wrapper then also casts the activations); keep f32 on v5e and for
    exact correctness checks.
    """
    ws, bs = params["ws"], params["bs"]          # (64,3), (64,)
    wa, ba = params["wa"], params["ba"]          # (64,1), (64,)
    wc, bc = params["wc"], params["bc"]          # (32,128), (32,)
    wo, bo = params["wo"], params["bo"]          # (1,32), (1,)

    # Block-diagonal fused input weight, transposed-compute layout (128,4):
    #   h = W_in @ [x;a]  ->  h[:64] = Ws@x + bs,  h[64:] = Wa@a + ba
    w_in = jnp.zeros((128, 4), jnp.float32)
    w_in = w_in.at[:64, :3].set(ws)              # state rows
    w_in = w_in.at[64:, 3:4].set(wa)             # action rows
    b_in = jnp.concatenate([bs, ba]).reshape(128, 1)

    return dict(
        w_in=w_in.astype(compute_dtype),          # (128, 4)
        b_in=b_in,                                # (128, 1) f32
        wc=wc.astype(compute_dtype),              # (32, 128) native layout
        bc=bc.reshape(32, 1),                     # f32
        wo=wo.reshape(32, 1),                     # f32 column, VPU broadcast
        bo=bo.reshape(1,),                        # f32 scalar (SMEM)
    )


# ---------------------------------------------------------------------------
# Wrapper
# ---------------------------------------------------------------------------
@functools.partial(jax.jit, static_argnames=("max_tile_b",))
def qnet_forward(x, a, prepared, *, max_tile_b=4096):
    """x: (B,3) f32, a: (B,1) f32 -> (B,1) f32."""
    B = x.shape[0]

    # Batch tile on the LANE axis: multiple of 128.  One grid step for small
    # batches, two for larger ones (lets the v7x second TensorCore pick up
    # the "parallel" axis; per-step overhead ~0.35us is negligible either
    # way), capped by max_tile_b.
    B_ceil = pl.cdiv(B, LANE) * LANE
    if B_ceil <= LANE:
        TB = LANE
    else:
        TB = min(max_tile_b, pl.cdiv(B_ceil, 2 * LANE) * LANE)
    num_tiles = pl.cdiv(B, TB)
    B_pad = num_tiles * TB

    # Single slab-materializing fusion: transpose + concat + pad of the tiny
    # 4-row input (XLA fuses these; no extra full-batch HBM round trip).
    xaT = jnp.concatenate([x.T, a.T], axis=0)                     # (4, B)
    if B_pad != B:
        xaT = jnp.pad(xaT, ((0, 0), (0, B_pad - B)))
    xaT = xaT.astype(prepared["w_in"].dtype)      # bf16 only if weights are

    def const_spec(shape):
        return pl.BlockSpec(shape, lambda i: (0, 0))

    out = pl.pallas_call(
        qnet_kernel,
        out_shape=jax.ShapeDtypeStruct((1, B_pad), jnp.float32),
        grid=(num_tiles,),
        in_specs=[
            pl.BlockSpec((4, TB), lambda i: (0, i)),   # xaT: lane-dense tiles
            const_spec((128, 4)),                      # w_in (VMEM-resident)
            const_spec((128, 1)),                      # b_in
            const_spec((32, 128)),                     # wc
            const_spec((32, 1)),                       # bc
            const_spec((32, 1)),                       # wo column
            pl.BlockSpec(memory_space=pltpu.MemorySpace.SMEM),   # bo scalar
        ],
        out_specs=pl.BlockSpec((1, TB), lambda i: (0, i)),
        compiler_params=pltpu.CompilerParams(
            dimension_semantics=("parallel",)),
    )(xaT, prepared["w_in"], prepared["b_in"], prepared["wc"],
      prepared["bc"], prepared["wo"], prepared["bo"])

    # Back to (B,1) batch-major; slice off padding after the reshape.
    return out[:, :B].T


# ---------------------------------------------------------------------------
# Init + pure-JAX reference
# ---------------------------------------------------------------------------
def init_params(key):
    """Deterministic init mimicking nn.Linear default (U(-1/sqrt(fan_in), +))."""
    def linear(key, fan_in, fan_out):
        k_w, k_b = jax.random.split(key)
        bound = 1.0 / jnp.sqrt(jnp.float32(fan_in))
        w = jax.random.uniform(k_w, (fan_out, fan_in), jnp.float32, -bound, bound)
        b = jax.random.uniform(k_b, (fan_out,), jnp.float32, -bound, bound)
        return w, b

    k1, k2, k3, k4 = jax.random.split(key, 4)
    ws, bs = linear(k1, 3, 64)     # fc_s
    wa, ba = linear(k2, 1, 64)     # fc_a
    wc, bc = linear(k3, 128, 32)   # fc_cat
    wo, bo = linear(k4, 32, 1)     # fc_out
    return dict(ws=ws, bs=bs, wa=wa, ba=ba, wc=wc, bc=bc, wo=wo, bo=bo)


def qnet_reference(x, a, p):
    """Pure-JAX reference of the PyTorch forward (for correctness check)."""
    h1 = jax.nn.relu(x @ p["ws"].T + p["bs"])
    h2 = jax.nn.relu(a @ p["wa"].T + p["ba"])
    cat = jnp.concatenate([h1, h2], axis=1)
    q = jax.nn.relu(cat @ p["wc"].T + p["bc"])
    return q @ p["wo"].T + p["bo"]


# TODO(synk): training side (Adam step, smooth_l1_loss, soft_update) is not a
# forward-pass op and is left to standard JAX/optax outside the kernel.

if __name__ == "__main__":
    key = jax.random.PRNGKey(0)
    k_params, k_x, k_a = jax.random.split(key, 3)

    params = init_params(k_params)
    prepared = prepare_params(params)                # one-time packing (f32)

    # Small shapes consistent with the module (Pendulum: state=3, action=1).
    B = 8
    x = jax.random.normal(k_x, (B, 3), jnp.float32)
    a = jax.random.normal(k_a, (B, 1), jnp.float32)

    out = qnet_forward(x, a, prepared)
    out = jax.block_until_ready(out)
    ref = qnet_reference(x, a, params)
    assert out.shape == (B, 1)
    assert jnp.allclose(out, ref, atol=1e-4, rtol=1e-4), (out, ref)

    # Also exercise the multi-tile / padded path (B not a tile multiple).
    B2 = 300
    k_x2, k_a2 = jax.random.split(jax.random.PRNGKey(1))
    x2 = jax.random.normal(k_x2, (B2, 3), jnp.float32)
    a2 = jax.random.normal(k_a2, (B2, 1), jnp.float32)
    out2 = jax.block_until_ready(qnet_forward(x2, a2, prepared))
    ref2 = qnet_reference(x2, a2, params)
    assert out2.shape == (B2, 1)
    assert jnp.allclose(out2, ref2, atol=1e-4, rtol=1e-4)

    print("KERNEL_OK")
</pallas_src>

<mosaic_0001>
module attributes {stable_mosaic.version = 11 : i64} {
  func.func @qnet_kernel(%arg0: i32, %arg1: memref<4x128xf32, #tpu.memory_space<vmem>>, %arg2: memref<128x4xf32, #tpu.memory_space<vmem>>, %arg3: memref<128x1xf32, #tpu.memory_space<vmem>>, %arg4: memref<32x128xf32, #tpu.memory_space<vmem>>, %arg5: memref<32x1xf32, #tpu.memory_space<vmem>>, %arg6: memref<32x1xf32, #tpu.memory_space<vmem>>, %arg7: memref<1xf32, #tpu.memory_space<smem>>, %arg8: memref<1x128xf32, #tpu.memory_space<vmem>>) attributes {dimension_semantics = [#tpu.dimension_semantics<parallel>], iteration_bounds = array<i64: 1>, scalar_prefetch = 0 : i64, scratch_operands = 0 : i64, tpu.core_type = #tpu.core_type<tc>, window_params = [{transform_indices = @transform_0, window_bounds = array<i64: 4, 128>}, {pipeline_mode = #tpu.pipeline_mode<synchronous>, transform_indices = @transform_1, window_bounds = array<i64: 128, 4>}, {pipeline_mode = #tpu.pipeline_mode<synchronous>, transform_indices = @transform_2, window_bounds = array<i64: 128, 1>}, {pipeline_mode = #tpu.pipeline_mode<synchronous>, transform_indices = @transform_3, window_bounds = array<i64: 32, 128>}, {pipeline_mode = #tpu.pipeline_mode<synchronous>, transform_indices = @transform_4, window_bounds = array<i64: 32, 1>}, {pipeline_mode = #tpu.pipeline_mode<synchronous>, transform_indices = @transform_5, window_bounds = array<i64: 32, 1>}, {transform_indices = @transform_6, window_bounds = array<i64: 1>}, {transform_indices = @transform_7, window_bounds = array<i64: 1, 128>}]} {
    %c0 = arith.constant 0 : index
    %c0_0 = arith.constant 0 : index
    %0 = vector.load %arg1[%c0, %c0_0] : memref<4x128xf32, #tpu.memory_space<vmem>>, vector<4x128xf32>
    %c0_1 = arith.constant 0 : index
    %c0_2 = arith.constant 0 : index
    %1 = vector.load %arg2[%c0_1, %c0_2] : memref<128x4xf32, #tpu.memory_space<vmem>>, vector<128x4xf32>
    %cst = arith.constant dense<0.000000e+00> : vector<128x128xf32>
    %2 = tpu.matmul %1, %0, %cst {dimension_numbers = #tpu.dot_dimension_numbers<[1], [0], [0], [1], [0, 0, 1, 1], [], []>} : vector<128x4xf32>, vector<4x128xf32>, vector<128x128xf32> -> vector<128x128xf32>
    %c0_3 = arith.constant 0 : index
    %c0_4 = arith.constant 0 : index
    %3 = vector.load %arg3[%c0_3, %c0_4] : memref<128x1xf32, #tpu.memory_space<vmem>>, vector<128x1xf32>
    %4 = vector.broadcast %3 : vector<128x1xf32> to vector<128x128xf32>
    %5 = arith.addf %2, %4 : vector<128x128xf32>
    %cst_5 = arith.constant 0.000000e+00 : f32
    %6 = vector.broadcast %cst_5 : f32 to vector<128x128xf32>
    %7 = arith.maximumf %5, %6 : vector<128x128xf32>
    %c0_6 = arith.constant 0 : index
    %c0_7 = arith.constant 0 : index
    %8 = vector.load %arg4[%c0_6, %c0_7] : memref<32x128xf32, #tpu.memory_space<vmem>>, vector<32x128xf32>
    %cst_8 = arith.constant dense<0.000000e+00> : vector<32x128xf32>
    %9 = tpu.matmul %8, %7, %cst_8 {dimension_numbers = #tpu.dot_dimension_numbers<[1], [0], [0], [1], [0, 0, 1, 1], [], []>} : vector<32x128xf32>, vector<128x128xf32>, vector<32x128xf32> -> vector<32x128xf32>
    %c0_9 = arith.constant 0 : index
    %c0_10 = arith.constant 0 : index
    %10 = vector.load %arg5[%c0_9, %c0_10] : memref<32x1xf32, #tpu.memory_space<vmem>>, vector<32x1xf32>
    %11 = vector.broadcast %10 : vector<32x1xf32> to vector<32x128xf32>
    %12 = arith.addf %9, %11 : vector<32x128xf32>
    %cst_11 = arith.constant 0.000000e+00 : f32
    %13 = vector.broadcast %cst_11 : f32 to vector<32x128xf32>
    %14 = arith.maximumf %12, %13 : vector<32x128xf32>
    %c0_12 = arith.constant 0 : index
    %c0_13 = arith.constant 0 : index
    %15 = vector.load %arg6[%c0_12, %c0_13] : memref<32x1xf32, #tpu.memory_space<vmem>>, vector<32x1xf32>
    %16 = vector.broadcast %15 : vector<32x1xf32> to vector<32x128xf32>
    %17 = arith.mulf %14, %16 : vector<32x128xf32>
    %cst_14 = arith.constant dense<0.000000e+00> : vector<128xf32>
    %18 = vector.multi_reduction <add>, %17, %cst_14 [0] : vector<32x128xf32> to vector<128xf32>
    %19 = vector.shape_cast %18 : vector<128xf32> to vector<1x128xf32>
    %c0_15 = arith.constant 0 : index
    %20 = memref.load %arg7[%c0_15] : memref<1xf32, #tpu.memory_space<smem>>
    %21 = vector.broadcast %20 : f32 to vector<1x128xf32>
    %22 = arith.addf %19, %21 : vector<1x128xf32>
    %c0_16 = arith.constant 0 : index
    %c0_17 = arith.constant 0 : index
    %23 = vector.load %arg8[%c0_16, %c0_17] : memref<1x128xf32, #tpu.memory_space<vmem>>, vector<1x128xf32>
    tpu.vector_store %arg8[%c0_16, %c0_17], %22 {strides = array<i32>} : memref<1x128xf32, #tpu.memory_space<vmem>>, vector<1x128xf32>,
    return
  }
  func.func @transform_0(%arg0: i32) -> (i32, i32) {
    %c0_i32 = arith.constant 0 : i32
    %c0_i32_0 = arith.constant 0 : i32
    return %c0_i32, %arg0 : i32, i32
  }
  func.func @transform_1(%arg0: i32) -> (i32, i32) {
    %c0_i32 = arith.constant 0 : i32
    %c0_i32_0 = arith.constant 0 : i32
    %c0_i32_1 = arith.constant 0 : i32
    return %c0_i32, %c0_i32_0 : i32, i32
  }
  func.func @transform_2(%arg0: i32) -> (i32, i32) {
    %c0_i32 = arith.constant 0 : i32
    %c0_i32_0 = arith.constant 0 : i32
    %c0_i32_1 = arith.constant 0 : i32
    return %c0_i32, %c0_i32_0 : i32, i32
  }
  func.func @transform_3(%arg0: i32) -> (i32, i32) {
    %c0_i32 = arith.constant 0 : i32
    %c0_i32_0 = arith.constant 0 : i32
    %c0_i32_1 = arith.constant 0 : i32
    return %c0_i32, %c0_i32_0 : i32, i32
  }
  func.func @transform_4(%arg0: i32) -> (i32, i32) {
    %c0_i32 = arith.constant 0 : i32
    %c0_i32_0 = arith.constant 0 : i32
    %c0_i32_1 = arith.constant 0 : i32
    return %c0_i32, %c0_i32_0 : i32, i32
  }
  func.func @transform_5(%arg0: i32) -> (i32, i32) {
    %c0_i32 = arith.constant 0 : i32
    %c0_i32_0 = arith.constant 0 : i32
    %c0_i32_1 = arith.constant 0 : i32
    return %c0_i32, %c0_i32_0 : i32, i32
  }
  func.func @transform_6(%arg0: i32) -> i32 {
    %c0_i32 = arith.constant 0 : i32
    %c0_i32_0 = arith.constant 0 : i32
    return %c0_i32 : i32
  }
  func.func @transform_7(%arg0: i32) -> (i32, i32) {
    %c0_i32 = arith.constant 0 : i32
    %c0_i32_0 = arith.constant 0 : i32
    return %c0_i32, %arg0 : i32, i32
  }
}

</mosaic_0001>

<llo_original>
// kernel: qnet_forward.1
$region0: #{qnet_forward.1}
  #allocation0 [shape = 'u32[]', space=smem, size = 0x4, offset = 0x4, fixed_abs, tag = 'smem constant byte address 0x4 - core index']
  #allocation1 [shape = 'u32[72,128]{1,0:T(1,128)}', space=vmem, size = 0x9000, scoped, tag = 'internal scratch']
  #allocation2 [shape = 'f32[1]{0:T(128)S(6)}', space=smem, size = 0x200, scoped, tag = 'scoped memory for qnet_forward.1']
  %s0 = inlined_call_operand.vmem [shape: f32[4,128], index: 0, kind: input, shape index: {}]
  %s1 = inlined_call_operand.vmem [shape: f32[128,4], index: 1, kind: input, shape index: {}]
  %s2 = inlined_call_operand.vmem [shape: f32[128,1], index: 2, kind: input, shape index: {}]
  %s3 = inlined_call_operand.vmem [shape: f32[32,128], index: 3, kind: input, shape index: {}]
  %s4 = inlined_call_operand.vmem [shape: f32[32,1], index: 4, kind: input, shape index: {}]
  %s5 = inlined_call_operand.vmem [shape: f32[32,1], index: 5, kind: input, shape index: {}]
  %s6 = inlined_call_operand.<no memory space> [shape: f32[1], index: 6, kind: input, shape index: {}]
  %s7 = inlined_call_operand.vmem [shape: f32[1,128], index: 7, kind: output, shape index: {}]
  %s8 = sld [smem:[#allocation0]]
  $region38: #{qnet_forward.1} parent=0
    _
  %s10 = ssub.s32 1, %s8
  %s11 = scalar_select 0, %s10, %s8
  %12 = sst [smem:[#allocation2]] %s6
  // Predicated region
  $region2: #{qnet_forward.1} parent=0 // pred_check
    _
  $region3: #{qnet_forward.1} parent=0 // pred_check_branch
    %14 = sbr.rel (0) target = $region5
  $region4: #{qnet_forward.1} parent=0 // pred_region
    _
  $region5: #{qnet_forward.1} parent=0 // pred_fallthru
    _
  // Predicated region
  $region6: #{qnet_forward.1} parent=0 // pred_check
    _
  $region7: #{qnet_forward.1} parent=0 // pred_check_branch
    %16 = sbr.rel (0) target = $region9
  $region8: #{qnet_forward.1} parent=0 // pred_region
    _
  $region9: #{qnet_forward.1} parent=0 // pred_fallthru
    _
  // Predicated region
  $region10: #{qnet_forward.1} parent=0 // pred_check
    _
  $region11: #{qnet_forward.1} parent=0 // pred_check_branch
    %18 = sbr.rel (0) target = $region13
  $region12: #{qnet_forward.1} parent=0 // pred_region
    _
  $region13: #{qnet_forward.1} parent=0 // pred_fallthru
    _
  // Predicated region
  $region14: #{qnet_forward.1} parent=0 // pred_check
    _
  $region15: #{qnet_forward.1} parent=0 // pred_check_branch
    %20 = sbr.rel (0) target = $region17
  $region16: #{qnet_forward.1} parent=0 // pred_region
    _
  $region17: #{qnet_forward.1} parent=0 // pred_fallthru
    _
  // Predicated region
  $region18: #{qnet_forward.1} parent=0 // pred_check
    _
  $region19: #{qnet_forward.1} parent=0 // pred_check_branch
    %22 = sbr.rel (0) target = $region21
  $region20: #{qnet_forward.1} parent=0 // pred_region
    _
  $region21: #{qnet_forward.1} parent=0 // pred_fallthru
    _
  // Predicated region
  $region22: #{qnet_forward.1} parent=0 // pred_check
    _
  $region23: #{qnet_forward.1} parent=0 // pred_check_branch
    %24 = sbr.rel (0) target = $region25
  $region24: #{qnet_forward.1} parent=0 // pred_region
    _
  $region25: #{qnet_forward.1} parent=0 // pred_fallthru
    _
  // Predicated region
  $region26: #{qnet_forward.1} parent=0 // pred_check
    _
  $region27: #{qnet_forward.1} parent=0 // pred_check_branch
    %26 = sbr.rel (0) target = $region29
  $region28: #{qnet_forward.1} parent=0 // pred_region
    _
  $region29: #{qnet_forward.1} parent=0 // pred_fallthru
    _
  %v27 = vld [vmem:[%s0] sm:$0xf]
  %v28 = vld [vmem:[%s1] sm:$0xff]
  %v29 = vld [vmem:[%s1 + $0x8] sm:$0xff]
  %v30 = vld [vmem:[%s1 + $0x10] sm:$0xff]
  %v31 = vld [vmem:[%s1 + $0x18] sm:$0xff]
  %v32 = vld [vmem:[%s1 + $0x20] sm:$0xff]
  %v33 = vld [vmem:[%s1 + $0x28] sm:$0xff]
  %v34 = vld [vmem:[%s1 + $0x30] sm:$0xff]
  %v35 = vld [vmem:[%s1 + $0x38] sm:$0xff]
  %v36 = vld [vmem:[%s1 + $0x40] sm:$0xff]
  %v37 = vld [vmem:[%s1 + $0x48] sm:$0xff]
  %v38 = vld [vmem:[%s1 + $0x50] sm:$0xff]
  %v39 = vld [vmem:[%s1 + $0x58] sm:$0xff]
  %v40 = vld [vmem:[%s1 + $0x60] sm:$0xff]
  %v41 = vld [vmem:[%s1 + $0x68] sm:$0xff]
  %v42 = vld [vmem:[%s1 + $0x70] sm:$0xff]
  %v43 = vld [vmem:[%s1 + $0x78] sm:$0xff]
  %v44 = vld [vmem:[%s2] sm:$0xff]
  %v45 = vld [vmem:[%s2 + $0x8] sm:$0xff]
  %v46 = vld [vmem:[%s2 + $0x10] sm:$0xff]
  %v47 = vld [vmem:[%s2 + $0x18] sm:$0xff]
  %v48 = vld [vmem:[%s2 + $0x20] sm:$0xff]
  %v49 = vld [vmem:[%s2 + $0x28] sm:$0xff]
  %v50 = vld [vmem:[%s2 + $0x30] sm:$0xff]
  %v51 = vld [vmem:[%s2 + $0x38] sm:$0xff]
  %v52 = vld [vmem:[%s2 + $0x40] sm:$0xff]
  %v53 = vld [vmem:[%s2 + $0x48] sm:$0xff]
  %v54 = vld [vmem:[%s2 + $0x50] sm:$0xff]
  %v55 = vld [vmem:[%s2 + $0x58] sm:$0xff]
  %v56 = vld [vmem:[%s2 + $0x60] sm:$0xff]
  %v57 = vld [vmem:[%s2 + $0x68] sm:$0xff]
  %v58 = vld [vmem:[%s2 + $0x70] sm:$0xff]
  %v59 = vld [vmem:[%s2 + $0x78] sm:$0xff]
  %61 = vset.pattern.permute.xlu0 0
  %62 = vperm.xlu0 %61, %v44
  %v63 = vpop.permute.xlu0 %62
  %66 = vset.pattern.permute.xlu0 0
  %67 = vperm.xlu0 %66, %v45
  %v68 = vpop.permute.xlu0 %67
  %71 = vset.pattern.permute.xlu0 0
  %72 = vperm.xlu0 %71, %v46
  %v73 = vpop.permute.xlu0 %72
  %76 = vset.pattern.permute.xlu0 0
  %77 = vperm.xlu0 %76, %v47
  %v78 = vpop.permute.xlu0 %77
  %81 = vset.pattern.permute.xlu0 0
  %82 = vperm.xlu0 %81, %v48
  %v83 = vpop.permute.xlu0 %82
  %86 = vset.pattern.permute.xlu0 0
  %87 = vperm.xlu0 %86, %v49
  %v88 = vpop.permute.xlu0 %87
  %91 = vset.pattern.permute.xlu0 0
  %92 = vperm.xlu0 %91, %v50
  %v93 = vpop.permute.xlu0 %92
  %96 = vset.pattern.permute.xlu0 0
  %97 = vperm.xlu0 %96, %v51
  %v98 = vpop.permute.xlu0 %97
  %101 = vset.pattern.permute.xlu0 0
  %102 = vperm.xlu0 %101, %v52
  %v103 = vpop.permute.xlu0 %102
  %106 = vset.pattern.permute.xlu0 0
  %107 = vperm.xlu0 %106, %v53
  %v108 = vpop.permute.xlu0 %107
  %111 = vset.pattern.permute.xlu0 0
  %112 = vperm.xlu0 %111, %v54
  %v113 = vpop.permute.xlu0 %112
  %116 = vset.pattern.permute.xlu0 0
  %117 = vperm.xlu0 %116, %v55
  %v118 = vpop.permute.xlu0 %117
  %121 = vset.pattern.permute.xlu0 0
  %122 = vperm.xlu0 %121, %v56
  %v123 = vpop.permute.xlu0 %122
  %126 = vset.pattern.permute.xlu0 0
  %127 = vperm.xlu0 %126, %v57
  %v128 = vpop.permute.xlu0 %127
  %131 = vset.pattern.permute.xlu0 0
  %132 = vperm.xlu0 %131, %v58
  %v133 = vpop.permute.xlu0 %132
  %136 = vset.pattern.permute.xlu0 0
  %137 = vperm.xlu0 %136, %v59
  %v138 = vpop.permute.xlu0 %137
  %vm140 = vcmask 31744
  %v142 = vsel %vm140, %v28, 0
  %v145 = vsel %vm140, %v29, 0
  %v148 = vsel %vm140, %v30, 0
  %v151 = vsel %vm140, %v31, 0
  %v154 = vsel %vm140, %v32, 0
  %v157 = vsel %vm140, %v33, 0
  %v160 = vsel %vm140, %v34, 0
  %v163 = vsel %vm140, %v35, 0
  %v166 = vsel %vm140, %v36, 0
  %v169 = vsel %vm140, %v37, 0
  %v172 = vsel %vm140, %v38, 0
  %v175 = vsel %vm140, %v39, 0
  %v178 = vsel %vm140, %v40, 0
  %v181 = vsel %vm140, %v41, 0
  %v184 = vsel %vm140, %v42, 0
  %v187 = vsel %vm140, %v43, 0
  %vm189 = vcmask 1043456
  %v191 = vsel %vm189, %v27, 0
  %193 = vmatpush.msra.mxu0 0.0
  %194 = vmatpush.msra.mxu0 0.0
  %195 = vmatpush.msra.mxu0 0.0
  %196 = vmatpush.msra.mxu0 0.0
  %197 = vmatpush.msra.mxu0 0.0
  %198 = vmatpush.msra.mxu0 0.0
  %199 = vmatpush.msra.mxu0 0.0
  %200 = vmatpush.msra.mxu0 0.0
  %201 = vmatpush.msra.mxu0 0.0
  %202 = vmatpush.msra.mxu0 0.0
  %203 = vmatpush.msra.mxu0 0.0
  %204 = vmatpush.msra.mxu0 0.0
  %205 = vmatpush.msra.mxu0 0.0
  %206 = vmatpush.msra.mxu0 0.0
  %207 = vmatpush.msra.mxu0 0.0
  %208 = vmatpush.msra.mxu0 %v191
  %209 = vmatmul.f32.gmra.mxu0 %v142
  %v210 = vpop.f32.mrf.mxu0
  %v211 = vadd.f32 %v63, %v210
  %212 = vmatmul.f32.gmra.mxu0 %v145
  %v213 = vpop.f32.mrf.mxu0
  %v214 = vadd.f32 %v68, %v213
  %215 = vmatmul.f32.gmra.mxu0 %v148
  %v216 = vpop.f32.mrf.mxu0
  %v217 = vadd.f32 %v73, %v216
  %218 = vmatmul.f32.gmra.mxu0 %v151
  %v219 = vpop.f32.mrf.mxu0
  %v220 = vadd.f32 %v78, %v219
  %221 = vmatmul.f32.gmra.mxu0 %v154
  %v222 = vpop.f32.mrf.mxu0
  %v223 = vadd.f32 %v83, %v222
  %224 = vmatmul.f32.gmra.mxu0 %v157
  %v225 = vpop.f32.mrf.mxu0
  %v226 = vadd.f32 %v88, %v225
  %227 = vmatmul.f32.gmra.mxu0 %v160
  %v228 = vpop.f32.mrf.mxu0
  %v229 = vadd.f32 %v93, %v228
  %230 = vmatmul.f32.gmra.mxu0 %v163
  %v231 = vpop.f32.mrf.mxu0
  %v232 = vadd.f32 %v98, %v231
  %233 = vmatmul.f32.gmra.mxu0 %v166
  %v234 = vpop.f32.mrf.mxu0
  %v235 = vadd.f32 %v103, %v234
  %236 = vmatmul.f32.gmra.mxu0 %v169
  %v237 = vpop.f32.mrf.mxu0
  %v238 = vadd.f32 %v108, %v237
  %239 = vmatmul.f32.gmra.mxu0 %v172
  %v240 = vpop.f32.mrf.mxu0
  %v241 = vadd.f32 %v113, %v240
  %242 = vmatmul.f32.gmra.mxu0 %v175
  %v243 = vpop.f32.mrf.mxu0
  %v244 = vadd.f32 %v118, %v243
  %245 = vmatmul.f32.gmra.mxu0 %v178
  %v246 = vpop.f32.mrf.mxu0
  %v247 = vadd.f32 %v123, %v246
  %248 = vmatmul.f32.gmra.mxu0 %v181
  %v249 = vpop.f32.mrf.mxu0
  %v250 = vadd.f32 %v128, %v249
  %251 = vmatmul.f32.gmra.mxu0 %v184
  %v252 = vpop.f32.mrf.mxu0
  %v253 = vadd.f32 %v133, %v252
  %254 = vmatmul.f32.gmra.mxu0 %v187
  %v255 = vpop.f32.mrf.mxu0
  %v256 = vadd.f32 %v138, %v255
  %257 = vdwg.mxu0
  %v258 = vmax.f32 %v211, 0.0
  %v259 = vmax.f32 %v214, 0.0
  %v260 = vmax.f32 %v217, 0.0
  %v261 = vmax.f32 %v220, 0.0
  %v262 = vmax.f32 %v223, 0.0
  %v263 = vmax.f32 %v226, 0.0
  %v264 = vmax.f32 %v229, 0.0
  %v265 = vmax.f32 %v232, 0.0
  %v266 = vmax.f32 %v235, 0.0
  %v267 = vmax.f32 %v238, 0.0
  %v268 = vmax.f32 %v241, 0.0
  %v269 = vmax.f32 %v244, 0.0
  %v270 = vmax.f32 %v247, 0.0
  %v271 = vmax.f32 %v250, 0.0
  %v272 = vmax.f32 %v253, 0.0
  %v273 = vmax.f32 %v256, 0.0
  %v274 = vld [vmem:[%s3] sm:$0xff]
  %v275 = vld [vmem:[%s3 + $0x8] sm:$0xff]
  %v276 = vld [vmem:[%s3 + $0x10] sm:$0xff]
  %v277 = vld [vmem:[%s3 + $0x18] sm:$0xff]
  %v278 = vld [vmem:[%s4] sm:$0xff]
  %v279 = vld [vmem:[%s4 + $0x8] sm:$0xff]
  %v280 = vld [vmem:[%s4 + $0x10] sm:$0xff]
  %v281 = vld [vmem:[%s4 + $0x18] sm:$0xff]
  %283 = vset.pattern.permute.xlu0 0
  %284 = vperm.xlu0 %283, %v278
  %v285 = vpop.permute.xlu0 %284
  %288 = vset.pattern.permute.xlu0 0
  %289 = vperm.xlu0 %288, %v279
  %v290 = vpop.permute.xlu0 %289
  %293 = vset.pattern.permute.xlu0 0
  %294 = vperm.xlu0 %293, %v280
  %v295 = vpop.permute.xlu0 %294
  %298 = vset.pattern.permute.xlu0 0
  %299 = vperm.xlu0 %298, %v281
  %v300 = vpop.permute.xlu0 %299
  %302 = vmatpush.msra.mxu0 %v273
  %303 = vmatpush.msra.mxu0 %v272
  %304 = vmatpush.msra.mxu0 %v271
  %305 = vmatpush.msra.mxu0 %v270
  %306 = vmatpush.msra.mxu0 %v269
  %307 = vmatpush.msra.mxu0 %v268
  %308 = vmatpush.msra.mxu0 %v267
  %309 = vmatpush.msra.mxu0 %v266
  %310 = vmatpush.msra.mxu0 %v265
  %311 = vmatpush.msra.mxu0 %v264
  %312 = vmatpush.msra.mxu0 %v263
  %313 = vmatpush.msra.mxu0 %v262
  %314 = vmatpush.msra.mxu0 %v261
  %315 = vmatpush.msra.mxu0 %v260
  %316 = vmatpush.msra.mxu0 %v259
  %317 = vmatpush.msra.mxu0 %v258
  %318 = vmatmul.f32.gmra.mxu0 %v274
  %v319 = vpop.f32.mrf.mxu0
  %v320 = vadd.f32 %v285, %v319
  %321 = vmatmul.f32.gmra.mxu0 %v275
  %v322 = vpop.f32.mrf.mxu0
  %v323 = vadd.f32 %v290, %v322
  %324 = vmatmul.f32.gmra.mxu0 %v276
  %v325 = vpop.f32.mrf.mxu0
  %v326 = vadd.f32 %v295, %v325
  %327 = vmatmul.f32.gmra.mxu0 %v277
  %v328 = vpop.f32.mrf.mxu0
  %v329 = vadd.f32 %v300, %v328
  %330 = vdwg.mxu0
  %v331 = vmax.f32 %v320, 0.0
  %v332 = vmax.f32 %v323, 0.0
  %v333 = vmax.f32 %v326, 0.0
  %v334 = vmax.f32 %v329, 0.0
  %v335 = vld [vmem:[%s5] sm:$0xff]
  %v336 = vld [vmem:[%s5 + $0x8] sm:$0xff]
  %v337 = vld [vmem:[%s5 + $0x10] sm:$0xff]
  %v338 = vld [vmem:[%s5 + $0x18] sm:$0xff]
  %340 = vset.pattern.permute.xlu0 0
  %341 = vperm.xlu0 %340, %v335
  %v342 = vpop.permute.xlu0 %341
  %345 = vset.pattern.permute.xlu0 0
  %346 = vperm.xlu0 %345, %v336
  %v347 = vpop.permute.xlu0 %346
  %350 = vset.pattern.permute.xlu0 0
  %351 = vperm.xlu0 %350, %v337
  %v352 = vpop.permute.xlu0 %351
  %355 = vset.pattern.permute.xlu0 0
  %356 = vperm.xlu0 %355, %v338
  %v357 = vpop.permute.xlu0 %356
  %v359 = vmul.f32 %v331, %v342
  %v360 = vmul.f32 %v332, %v347
  %v361 = vmul.f32 %v333, %v352
  %v362 = vmul.f32 %v334, %v357
  %v363 = vadd.f32 %v359, %v360
  %v364 = vadd.f32 %v363, %v361
  %v365 = vadd.f32 %v364, %v362
  %v366 = vrot.slane %v365, 4
  %v367 = vadd.f32 %v365, %v366
  %v368 = vrot.slane %v367, 2
  %v369 = vadd.f32 %v367, %v368
  %v370 = vrot.slane %v369, 1
  %v371 = vadd.f32 %v369, %v370
  %s372 = sld [smem:[#allocation2]]
  %v373 = vstv %s372
  %v374 = vadd.f32 %v371, %v373
  %375 = vst [vmem:[%s7] sm:$0x1] %v374
  // Predicated region
  $region30: #{qnet_forward.1} parent=0 // pred_check
    _
  $region31: #{qnet_forward.1} parent=0 // pred_check_branch
    %377 = sbr.rel (0) target = $region33
  $region32: #{qnet_forward.1} parent=0 // pred_region
    _
  $region33: #{qnet_forward.1} parent=0 // pred_fallthru
    _
  // Predicated region
  $region34: #{qnet_forward.1} parent=0 // pred_check
    _
  $region35: #{qnet_forward.1} parent=0 // pred_check_branch
    %379 = sbr.rel (0) target = $region37
  $region36: #{qnet_forward.1} parent=0 // pred_region
    _
  $region37: #{qnet_forward.1} parent=0 // pred_fallthru
    _

</llo_original>
